<compile_context>
chip_gen: v5e
topology: v5e:2x2
jax: 0.10.0
libtpu: 0.0.40
codegen_flags: <defaults>
</compile_context>

<pallas_src>
import jax
import jax.numpy as jnp
from jax.experimental import pallas as pl
from jax.experimental.pallas import tpu as pltpu


def _concat_pooling_kernel(*refs):
    """refs = (layer_0_ref, ..., layer_{n-1}_ref, out_ref), newest layer first.

    layer_j_ref: (TB, seq_blk, H) VMEM block (seq-block 0 -> contains CLS row 0).
    out_ref:     (TB, n_layers * H) VMEM block.
    """
    *layer_refs, out_ref = refs
    h = layer_refs[0].shape[-1]
    for j, lref in enumerate(layer_refs):               # static unroll over layers
        out_ref[:, j * h:(j + 1) * h] = lref[:, 0, :]   # CLS token (seq position 0)


def _sublane_rows(dtype):
    """Native sublane-tile rows for a dtype: 8 (f32), 16 (bf16/f16), 32 (int8/fp8)."""
    itemsize = jnp.dtype(dtype).itemsize
    return max(8, 32 // max(itemsize, 1))


def concat_pooling(all_hidden_states, n_layers, *, vmem_budget_bytes=16 * 1024 * 1024):
    """ConcatPooling.forward.

    all_hidden_states: sequence of [B, S, H] hidden states, oldest -> newest
    (like the HF `hidden_states` tuple).
    Returns [B, n_layers * H]: concat of CLS features of the last n_layers
    layers, newest layer first.
    """
    hs = tuple(all_hidden_states)
    assert n_layers >= 1, "n_layers must be >= 1"
    assert n_layers <= len(hs), "n_layers exceeds number of hidden states"

    selected = [hs[-(i + 1)] for i in range(n_layers)]   # newest layer first
    B, S, H = selected[0].shape
    dtype = selected[0].dtype
    for x in selected:
        assert x.shape == (B, S, H) and x.dtype == dtype, (
            "all selected hidden states must share shape and dtype")

    # --- seq tile: only the first sublane tile (contains the CLS row) is DMA'd,
    # sized to the dtype's native tiling (or full S if shorter).
    sub = _sublane_rows(dtype)
    seq_blk = S if S < sub else sub

    # --- batch tile: bound VMEM (double-buffered inputs + double-buffered
    # output) to an explicit budget that fits every TPU generation.
    itemsize = jnp.dtype(dtype).itemsize
    bytes_per_batch_row = 2 * n_layers * H * itemsize * (seq_blk + 1)
    tb = max(8, (vmem_budget_bytes // bytes_per_batch_row) // 8 * 8)
    tb = min(tb, 512)                      # copy kernel is latency-bound; cap the tile

    # --- pad B so every batch block is full and sublane-aligned.
    b_pad = max(8, -(-B // 8) * 8)
    tb = min(tb, b_pad)
    b_pad = -(-b_pad // tb) * tb
    if b_pad != B:
        selected = [jnp.pad(x, ((0, b_pad - B), (0, 0), (0, 0))) for x in selected]

    grid = (b_pad // tb,)

    out_padded = pl.pallas_call(
        _concat_pooling_kernel,
        out_shape=jax.ShapeDtypeStruct((b_pad, n_layers * H), dtype),
        grid=grid,
        in_specs=[
            pl.BlockSpec((tb, seq_blk, H), lambda b: (b, 0, 0))
            for _ in range(n_layers)
        ],
        out_specs=pl.BlockSpec((tb, n_layers * H), lambda b: (b, 0)),
        compiler_params=pltpu.CompilerParams(
            # Batch tiles are independent -> shard across v7x's two TensorCores.
            dimension_semantics=("parallel",),
        ),
    )(*selected)

    return out_padded[:B]


if __name__ == "__main__":
    key = jax.random.PRNGKey(0)

    def reference(hidden_states, n_layers):
        return jnp.concatenate(
            [hidden_states[-(i + 1)][:, 0, :] for i in range(n_layers)], axis=-1
        )

    # 1) Small shapes consistent with the module's forward:
    #    L = 5 hidden states (embeddings + 4 layers), batch=2, seq=8, hidden=128
    #    pooling_config.n_layers = 3 -> output_dim = 3 * 128 = 384
    L, B, S, H = 5, 2, 8, 128
    n_layers = 3
    stacked = jax.random.normal(key, (L, B, S, H), dtype=jnp.float32)
    all_hidden_states = tuple(stacked[l] for l in range(L))

    out = concat_pooling(all_hidden_states, n_layers)
    out = jax.block_until_ready(out)
    ref = reference(all_hidden_states, n_layers)
    assert out.shape == (B, n_layers * H)
    assert jnp.allclose(out, ref), "mismatch vs reference (f32, single tile)"

    # 2) Multi-tile batch path (tiny VMEM budget forces TB=8, grid=(3,)).
    L2, B2, S2, H2, n2 = 4, 20, 16, 128, 2
    key2 = jax.random.fold_in(key, 1)
    stacked2 = jax.random.normal(key2, (L2, B2, S2, H2), dtype=jnp.float32)
    hs2 = tuple(stacked2[l] for l in range(L2))
    out2 = jax.block_until_ready(concat_pooling(hs2, n2, vmem_budget_bytes=1))
    assert jnp.allclose(out2, reference(hs2, n2)), "mismatch vs reference (multi-tile)"

    # 3) bf16 path exercises the dtype-aware seq tile.
    hs3 = tuple(h.astype(jnp.bfloat16) for h in hs2)
    out3 = jax.block_until_ready(concat_pooling(hs3, n2))
    assert jnp.array_equal(out3, reference(hs3, n2)), "mismatch vs reference (bf16)"

    print("KERNEL_OK")
</pallas_src>

<mosaic_0001>
module attributes {stable_mosaic.version = 11 : i64} {
  func.func @_concat_pooling_kernel(%arg0: i32, %arg1: memref<8x8x128xf32, #tpu.memory_space<vmem>>, %arg2: memref<8x8x128xf32, #tpu.memory_space<vmem>>, %arg3: memref<8x8x128xf32, #tpu.memory_space<vmem>>, %arg4: memref<8x384xf32, #tpu.memory_space<vmem>>) attributes {dimension_semantics = [#tpu.dimension_semantics<parallel>], iteration_bounds = array<i64: 1>, scalar_prefetch = 0 : i64, scratch_operands = 0 : i64, tpu.core_type = #tpu.core_type<tc>, window_params = [{transform_indices = @transform_0, window_bounds = array<i64: 8, 8, 128>}, {transform_indices = @transform_1, window_bounds = array<i64: 8, 8, 128>}, {transform_indices = @transform_2, window_bounds = array<i64: 8, 8, 128>}, {transform_indices = @transform_3, window_bounds = array<i64: 8, 384>}]} {
    %c0 = arith.constant 0 : index
    %c0_0 = arith.constant 0 : index
    %c0_1 = arith.constant 0 : index
    %0 = vector.load %arg1[%c0, %c0_0, %c0_1] : memref<8x8x128xf32, #tpu.memory_space<vmem>>, vector<8x1x128xf32>
    %1 = vector.shape_cast %0 : vector<8x1x128xf32> to vector<8x128xf32>
    %c0_2 = arith.constant 0 : index
    %c0_3 = arith.constant 0 : index
    %2 = vector.load %arg4[%c0_2, %c0_3] : memref<8x384xf32, #tpu.memory_space<vmem>>, vector<8x128xf32>
    tpu.vector_store %arg4[%c0_2, %c0_3], %1 {strides = array<i32>} : memref<8x384xf32, #tpu.memory_space<vmem>>, vector<8x128xf32>,
    %c0_4 = arith.constant 0 : index
    %c0_5 = arith.constant 0 : index
    %c0_6 = arith.constant 0 : index
    %3 = vector.load %arg2[%c0_4, %c0_5, %c0_6] : memref<8x8x128xf32, #tpu.memory_space<vmem>>, vector<8x1x128xf32>
    %4 = vector.shape_cast %3 : vector<8x1x128xf32> to vector<8x128xf32>
    %c0_7 = arith.constant 0 : index
    %c128 = arith.constant 128 : index
    %5 = vector.load %arg4[%c0_7, %c128] : memref<8x384xf32, #tpu.memory_space<vmem>>, vector<8x128xf32>
    tpu.vector_store %arg4[%c0_7, %c128], %4 {strides = array<i32>} : memref<8x384xf32, #tpu.memory_space<vmem>>, vector<8x128xf32>,
    %c0_8 = arith.constant 0 : index
    %c0_9 = arith.constant 0 : index
    %c0_10 = arith.constant 0 : index
    %6 = vector.load %arg3[%c0_8, %c0_9, %c0_10] : memref<8x8x128xf32, #tpu.memory_space<vmem>>, vector<8x1x128xf32>
    %7 = vector.shape_cast %6 : vector<8x1x128xf32> to vector<8x128xf32>
    %c0_11 = arith.constant 0 : index
    %c256 = arith.constant 256 : index
    %8 = vector.load %arg4[%c0_11, %c256] : memref<8x384xf32, #tpu.memory_space<vmem>>, vector<8x128xf32>
    tpu.vector_store %arg4[%c0_11, %c256], %7 {strides = array<i32>} : memref<8x384xf32, #tpu.memory_space<vmem>>, vector<8x128xf32>,
    return
  }
  func.func @transform_0(%arg0: i32) -> (i32, i32, i32) {
    %c0_i32 = arith.constant 0 : i32
    %c0_i32_0 = arith.constant 0 : i32
    %c0_i32_1 = arith.constant 0 : i32
    return %arg0, %c0_i32, %c0_i32_0 : i32, i32, i32
  }
  func.func @transform_1(%arg0: i32) -> (i32, i32, i32) {
    %c0_i32 = arith.constant 0 : i32
    %c0_i32_0 = arith.constant 0 : i32
    %c0_i32_1 = arith.constant 0 : i32
    return %arg0, %c0_i32, %c0_i32_0 : i32, i32, i32
  }
  func.func @transform_2(%arg0: i32) -> (i32, i32, i32) {
    %c0_i32 = arith.constant 0 : i32
    %c0_i32_0 = arith.constant 0 : i32
    %c0_i32_1 = arith.constant 0 : i32
    return %arg0, %c0_i32, %c0_i32_0 : i32, i32, i32
  }
  func.func @transform_3(%arg0: i32) -> (i32, i32) {
    %c0_i32 = arith.constant 0 : i32
    %c0_i32_0 = arith.constant 0 : i32
    return %arg0, %c0_i32 : i32, i32
  }
}

</mosaic_0001>

<llo_original>
// kernel: tpu_custom_call.1
$region0: #{tpu_custom_call.1}
  #allocation0 [shape = 'u32[]', space=smem, size = 0x4, offset = 0x4, fixed_abs, tag = 'smem constant byte address 0x4 - core index']
  #allocation1 [shape = 'u32[72,128]{1,0:T(1,128)}', space=vmem, size = 0x9000, scoped, tag = 'internal scratch']
  %s0 = inlined_call_operand.hbm [shape: f32[8,8,128], index: 0, kind: input, shape index: {}]
  %s1 = inlined_call_operand.hbm [shape: f32[8,8,128], index: 1, kind: input, shape index: {}]
  %s2 = inlined_call_operand.hbm [shape: f32[8,8,128], index: 2, kind: input, shape index: {}]
  %s3 = inlined_call_operand.hbm [shape: f32[8,384], index: 3, kind: output, shape index: {}]
  %s4 = sld [smem:[#allocation0]]
  $region34: #{tpu_custom_call.1} parent=0
    _
  %s6 = ssub.s32 1, %s4
  %s7 = scalar_select 0, %s6, %s4
  $region1: #{tpu_custom_call.1} parent=0
    #allocation2 [shape = 'u8[32768]{0}', space=vmem, size = 0x8000, scoped, tag = 'input window, operand 0, single buffered']
    #allocation3 [shape = 's32[1]{0}', space=sflag, size = 0x4, scoped, tag = 'scoped memory for tpu_custom_call.1']
    #allocation4 [shape = 's32[1]{0}', space=sflag, size = 0x4, scoped, tag = 'scoped memory for tpu_custom_call.1']
    #allocation5 [shape = 'u8[32768]{0}', space=vmem, size = 0x8000, scoped, tag = 'input window, operand 1, single buffered']
    #allocation6 [shape = 's32[1]{0}', space=sflag, size = 0x4, scoped, tag = 'scoped memory for tpu_custom_call.1']
    #allocation7 [shape = 'u8[32768]{0}', space=vmem, size = 0x8000, scoped, tag = 'input window, operand 2, single buffered']
    #allocation8 [shape = 'u8[12288]{0}', space=vmem, size = 0x3000, scoped, tag = 'output window, operand 0, single buffered']
    %8 = vsyncpa [#allocation3], 0
    %9 = vsyncpa [#allocation6], 0
    %10 = vsyncpa [#allocation4], 0
    // Predicated region
    $region2: #{tpu_custom_call.1} parent=1 // pred_check
      _
    $region3: #{tpu_custom_call.1} parent=1 // pred_check_branch
      %12 = sbr.rel (0) target = $region5
    $region4: #{tpu_custom_call.1} parent=1 // pred_region
      %14 = vsyncadd [#allocation3], 0
      %s15 = sshll.u32 %s0, 4
      %s16 = int_to_ptr.hbm [resolvable:$true] %s15
      %s17 = sshll.u32 [#allocation2], 4
      %s18 = int_to_ptr.vmem [resolvable:$true] %s17
      %23 = dma.hbm_to_vmem [thread:$0]  %s16, 1024, %s18, [#allocation3], 128, 128, 8
    $region5: #{tpu_custom_call.1} parent=1 // pred_fallthru
      _
    // Predicated region
    $region6: #{tpu_custom_call.1} parent=1 // pred_check
      _
    $region7: #{tpu_custom_call.1} parent=1 // pred_check_branch
      %25 = sbr.rel (0) target = $region9
    $region8: #{tpu_custom_call.1} parent=1 // pred_region
      %27 = vsyncadd [#allocation6], 0
      %s28 = sshll.u32 %s1, 4
      %s29 = int_to_ptr.hbm [resolvable:$true] %s28
      %s30 = sshll.u32 [#allocation5], 4
      %s31 = int_to_ptr.vmem [resolvable:$true] %s30
      %36 = dma.hbm_to_vmem [thread:$0]  %s29, 1024, %s31, [#allocation6], 128, 128, 8
    $region9: #{tpu_custom_call.1} parent=1 // pred_fallthru
      _
    // Predicated region
    $region10: #{tpu_custom_call.1} parent=1 // pred_check
      _
    $region11: #{tpu_custom_call.1} parent=1 // pred_check_branch
      %38 = sbr.rel (0) target = $region13
    $region12: #{tpu_custom_call.1} parent=1 // pred_region
      %40 = vsyncadd [#allocation6], 0
      %s41 = sshll.u32 %s2, 4
      %s42 = int_to_ptr.hbm [resolvable:$true] %s41
      %s43 = sshll.u32 [#allocation7], 4
      %s44 = int_to_ptr.vmem [resolvable:$true] %s43
      %49 = dma.hbm_to_vmem [thread:$0]  %s42, 1024, %s44, [#allocation6], 128, 128, 8
    $region13: #{tpu_custom_call.1} parent=1 // pred_fallthru
      _
    // Predicated region
    $region14: #{tpu_custom_call.1} parent=1 // pred_check
      _
    $region15: #{tpu_custom_call.1} parent=1 // pred_check_branch
      %51 = sbr.rel (0) target = $region17
    $region16: #{tpu_custom_call.1} parent=1 // pred_region
      %53 = dma.done [#allocation3], 1024
    $region17: #{tpu_custom_call.1} parent=1 // pred_fallthru
      _
    // Predicated region
    $region18: #{tpu_custom_call.1} parent=1 // pred_check
      _
    $region19: #{tpu_custom_call.1} parent=1 // pred_check_branch
      %55 = sbr.rel (0) target = $region21
    $region20: #{tpu_custom_call.1} parent=1 // pred_region
      %57 = dma.done [#allocation6], 1024
    $region21: #{tpu_custom_call.1} parent=1 // pred_fallthru
      _
    // Predicated region
    $region22: #{tpu_custom_call.1} parent=1 // pred_check
      _
    $region23: #{tpu_custom_call.1} parent=1 // pred_check_branch
      %59 = sbr.rel (0) target = $region25
    $region24: #{tpu_custom_call.1} parent=1 // pred_region
      %61 = dma.done [#allocation6], 1024
    $region25: #{tpu_custom_call.1} parent=1 // pred_fallthru
      _
    %v62 = vld [vmem:[#allocation2] sm:$0x1]
    %v63 = vld [vmem:[#allocation2 + $0x8] sm:$0x1]
    %v64 = vld [vmem:[#allocation2 + $0x10] sm:$0x1]
    %v65 = vld [vmem:[#allocation2 + $0x18] sm:$0x1]
    %v66 = vld [vmem:[#allocation2 + $0x20] sm:$0x1]
    %v67 = vld [vmem:[#allocation2 + $0x28] sm:$0x1]
    %v68 = vld [vmem:[#allocation2 + $0x30] sm:$0x1]
    %v69 = vld [vmem:[#allocation2 + $0x38] sm:$0x1]
    %v78 = vrot.slane %v63, 7
    %vm79 = vcmask 1041409
    %v80 = vsel %vm79, %v78, %v62
    %v81 = vrot.slane %v64, 6
    %vm82 = vcmask 1042434
    %v83 = vsel %vm82, %v81, %v80
    %v84 = vrot.slane %v65, 5
    %vm85 = vcmask 1043459
    %v86 = vsel %vm85, %v84, %v83
    %v87 = vrot.slane %v66, 4
    %vm88 = vcmask 1044484
    %v89 = vsel %vm88, %v87, %v86
    %v90 = vrot.slane %v67, 3
    %vm91 = vcmask 1045509
    %v92 = vsel %vm91, %v90, %v89
    %v93 = vrot.slane %v68, 2
    %vm94 = vcmask 1046534
    %v95 = vsel %vm94, %v93, %v92
    %v96 = vrot.slane %v69, 1
    %vm97 = vcmask 1047559
    %v98 = vsel %vm97, %v96, %v95
    %100 = vst [vmem:[#allocation8] sm:$0xff] %v98
    %v101 = vld [vmem:[#allocation5] sm:$0x1]
    %v102 = vld [vmem:[#allocation5 + $0x8] sm:$0x1]
    %v103 = vld [vmem:[#allocation5 + $0x10] sm:$0x1]
    %v104 = vld [vmem:[#allocation5 + $0x18] sm:$0x1]
    %v105 = vld [vmem:[#allocation5 + $0x20] sm:$0x1]
    %v106 = vld [vmem:[#allocation5 + $0x28] sm:$0x1]
    %v107 = vld [vmem:[#allocation5 + $0x30] sm:$0x1]
    %v108 = vld [vmem:[#allocation5 + $0x38] sm:$0x1]
    %v117 = vrot.slane %v102, 7
    %v118 = vsel %vm79, %v117, %v101
    %v119 = vrot.slane %v103, 6
    %v120 = vsel %vm82, %v119, %v118
    %v121 = vrot.slane %v104, 5
    %v122 = vsel %vm85, %v121, %v120
    %v123 = vrot.slane %v105, 4
    %v124 = vsel %vm88, %v123, %v122
    %v125 = vrot.slane %v106, 3
    %v126 = vsel %vm91, %v125, %v124
    %v127 = vrot.slane %v107, 2
    %v128 = vsel %vm94, %v127, %v126
    %v129 = vrot.slane %v108, 1
    %v130 = vsel %vm97, %v129, %v128
    %132 = vst [vmem:[#allocation8 + $0x8] sm:$0xff] %v130
    %v133 = vld [vmem:[#allocation7] sm:$0x1]
    %v134 = vld [vmem:[#allocation7 + $0x8] sm:$0x1]
    %v135 = vld [vmem:[#allocation7 + $0x10] sm:$0x1]
    %v136 = vld [vmem:[#allocation7 + $0x18] sm:$0x1]
    %v137 = vld [vmem:[#allocation7 + $0x20] sm:$0x1]
    %v138 = vld [vmem:[#allocation7 + $0x28] sm:$0x1]
    %v139 = vld [vmem:[#allocation7 + $0x30] sm:$0x1]
    %v140 = vld [vmem:[#allocation7 + $0x38] sm:$0x1]
    %v149 = vrot.slane %v134, 7
    %v150 = vsel %vm79, %v149, %v133
    %v151 = vrot.slane %v135, 6
    %v152 = vsel %vm82, %v151, %v150
    %v153 = vrot.slane %v136, 5
    %v154 = vsel %vm85, %v153, %v152
    %v155 = vrot.slane %v137, 4
    %v156 = vsel %vm88, %v155, %v154
    %v157 = vrot.slane %v138, 3
    %v158 = vsel %vm91, %v157, %v156
    %v159 = vrot.slane %v139, 2
    %v160 = vsel %vm94, %v159, %v158
    %v161 = vrot.slane %v140, 1
    %v162 = vsel %vm97, %v161, %v160
    %164 = vst [vmem:[#allocation8 + $0x10] sm:$0xff] %v162
    // Predicated region
    $region26: #{tpu_custom_call.1} parent=1 // pred_check
      _
    $region27: #{tpu_custom_call.1} parent=1 // pred_check_branch
      %166 = sbr.rel (0) target = $region29
    $region28: #{tpu_custom_call.1} parent=1 // pred_region
      %168 = vsyncadd [#allocation4], 0
      %s170 = sshll.u32 [#allocation8], 4
      %s171 = int_to_ptr.vmem [resolvable:$true] %s170
      %s172 = sshll.u32 %s3, 4
      %s173 = int_to_ptr.hbm [resolvable:$true] %s172
      %175 = dma.vmem_to_hbm [thread:$0]  %s171, 384, %s173, [#allocation4]
    $region29: #{tpu_custom_call.1} parent=1 // pred_fallthru
      _
    // Predicated region
    $region30: #{tpu_custom_call.1} parent=1 // pred_check
      _
    $region31: #{tpu_custom_call.1} parent=1 // pred_check_branch
      %177 = sbr.rel (0) target = $region33
    $region32: #{tpu_custom_call.1} parent=1 // pred_region
      %179 = dma.done [#allocation4], 384
    $region33: #{tpu_custom_call.1} parent=1 // pred_fallthru
      _
    %180 = vsyncpa [#allocation3], 1
    %181 = vsyncpa [#allocation6], 1
    %182 = vsyncpa [#allocation4], 1

</llo_original>
